<compile_context>
chip_gen: v7x
topology: tpu7x:2x2x1
jax: 0.10.0
libtpu: 0.0.40
codegen_flags: <defaults>
</compile_context>

<pallas_src>
import functools

import jax
import jax.numpy as jnp
import numpy as np
from jax.experimental import pallas as pl
from jax.experimental.pallas import tpu as pltpu


def _round_up(x, m):
    return ((x + m - 1) // m) * m


def convbn_relu_kernel(eps, m_real, n_pad, xcol_ref, w_ref, gamma_ref, beta_ref,
                       out_ref, s1_ref, s2_ref, pilot_ref, scale_ref, shift_ref):
    """Two-phase fused conv(as matmul) + BatchNorm(batch stats) + ReLU.

    grid = (phase, m_tiles); phase 0 accumulates per-channel statistics,
    phase 1 applies the folded affine + ReLU.

    xcol_ref:  [TM, Kp]  im2col tile          w_ref:    [Kp, Cp]  packed weights
    gamma_ref: [1, Cp]   BN weight (f32)      beta_ref: [1, Cp]   BN bias (f32)
    out_ref:   [TM, Cp]  lane-dense output tile (written in phase 1 only)
    s1/s2:     [8, Cp]   f32 centered sum / sum-of-squares accumulators
    pilot/scale/shift: [1, Cp] f32 scratch (persist across grid steps)
    """
    p = pl.program_id(0)        # 0 = statistics pass, 1 = normalize pass
    m = pl.program_id(1)        # M-tile index
    n_m = pl.num_programs(1)

    # Conv tile as a single MXU matmul; operands stay in their native dtype
    # (bf16 feeds the MXU directly), accumulation is f32.
    y = jnp.dot(xcol_ref[...], w_ref[...], preferred_element_type=jnp.float32)

    @pl.when(p == 0)
    def _stats_pass():
        @pl.when(m == 0)
        def _init():
            s1_ref[...] = jnp.zeros_like(s1_ref)
            s2_ref[...] = jnp.zeros_like(s2_ref)
            # Per-channel pilot shift (mean of the first tile) conditions the
            # one-pass variance against cancellation.
            pilot_ref[...] = (jnp.sum(y, axis=0, keepdims=True)
                              * (1.0 / y.shape[0]))

        pilot = pilot_ref[...]
        yc = y - pilot                                  # centered values
        tm, cp = yc.shape
        yc3 = yc.reshape(tm // 8, 8, cp)
        # Reduce over the vreg-group axis only (pure VPU adds); the 8->1
        # cross-sublane XLU collapse is deferred to the finalize step.
        s1_ref[...] += jnp.sum(yc3, axis=0)
        s2_ref[...] += jnp.sum(yc3 * yc3, axis=0)
        # NOTE: no store to out_ref in phase 0 (output block stays resident).

        @pl.when(m == n_m - 1)
        def _finalize():
            pv = pilot_ref[...]
            # Padded (all-zero) rows contributed (0 - pilot) each; remove them
            # exactly (their y is exactly 0 because the xcol rows are zero).
            s1 = jnp.sum(s1_ref[...], axis=0, keepdims=True) + n_pad * pv
            s2 = jnp.sum(s2_ref[...], axis=0, keepdims=True) - n_pad * pv * pv
            inv_m = 1.0 / m_real
            d = s1 * inv_m                               # mean - pilot
            mean = pv + d
            var = jnp.maximum(s2 * inv_m - d * d, 0.0)
            scale = gamma_ref[...] * jax.lax.rsqrt(var + eps)
            scale_ref[...] = scale
            shift_ref[...] = beta_ref[...] - mean * scale

    @pl.when(p == 1)
    def _normalize_pass():
        out_ref[...] = jnp.maximum(
            y * scale_ref[...] + shift_ref[...], 0.0).astype(out_ref.dtype)


def conv_block_bn(x, weight, bias, gamma, beta, *, stride=1, padding=0,
                  eps=1e-5, tile_m=None):
    """Forward pass of ConvBlockBN (activation='relu').

    x:      [N, Cin, H, W]   (NCHW, matching PyTorch)
    weight: [Cout, Cin, KH, KW]
    bias, gamma, beta: [Cout]
    returns [N, Cout, OH, OW]
    """
    # The conv bias is exactly cancelled by training-mode BN's mean subtraction,
    # so it never enters the kernel (one fewer [M, C] VPU pass + one fewer DMA).
    del bias

    N, Cin, H, W = x.shape
    Cout, _, KH, KW = weight.shape
    sh = sw = int(stride)
    ph = pw = int(padding)
    OH = (H + 2 * ph - KH) // sh + 1
    OW = (W + 2 * pw - KW) // sw + 1
    M = N * OH * OW
    K = KH * KW * Cin

    # K: lane-dense (mult. of 128) only if the padding overhead is small.
    k8 = _round_up(K, 8)
    k128 = _round_up(K, 128)
    Kp = k128 if k128 <= int(1.15 * k8) else k8
    # Channels: lane-dense output; never pad beyond the 128 boundary needed.
    Cp = _round_up(Cout, 128)

    # ---- glue: im2col patch extraction (pure data movement) ----
    # TODO(synk): move this in-kernel (KH*KW shifted matmuls from padded NHWC)
    # to avoid the 9x HBM expansion; kept wrapper-side for robustness.
    x_nhwc = jnp.transpose(x, (0, 2, 3, 1))                       # [N, H, W, Cin]
    x_pad = jnp.pad(x_nhwc, ((0, 0), (ph, ph), (pw, pw), (0, 0)))
    patches = []
    for kh in range(KH):
        for kw in range(KW):
            patches.append(
                x_pad[:, kh:kh + sh * OH:sh, kw:kw + sw * OW:sw, :])  # [N,OH,OW,Cin]
    xcol = jnp.stack(patches, axis=3).reshape(M, K)                # [M, K]

    wcol = jnp.transpose(weight, (2, 3, 1, 0)).reshape(K, Cout)    # [K, Cout]
    wcol = jnp.pad(wcol, ((0, Kp - K), (0, Cp - Cout)))            # [Kp, Cp]
    gamma_p = jnp.pad(gamma.astype(jnp.float32), (0, Cp - Cout)).reshape(1, Cp)
    beta_p = jnp.pad(beta.astype(jnp.float32), (0, Cp - Cout)).reshape(1, Cp)

    # ---- generation-aware VMEM budget -> M tile ----
    try:
        cap = int(getattr(pltpu.get_tpu_info(), "vmem_capacity_bytes",
                          64 * 1024 * 1024))
    except Exception:
        cap = 64 * 1024 * 1024                       # conservative (v7x-sized)
    vmem_limit = min(int(0.75 * cap), 96 * 1024 * 1024)

    x_isz = x.dtype.itemsize
    w_isz = weight.dtype.itemsize
    if tile_m is None:
        # double-buffered xcol + out tiles, ~3 f32 [TM,Cp] temporaries,
        # double-buffered resident weight block, small per-channel scratch.
        fixed = 2 * Kp * Cp * w_isz + 32 * Cp * 4
        per_row = 2 * Kp * x_isz + 2 * Cp * x_isz + 3 * Cp * 4
        avail = max(int(0.8 * vmem_limit) - fixed, 8 * per_row)
        tm = min(1024, avail // per_row)             # 512-1024 ~ 85% of roofline
        tm = min(tm, _round_up(M, 8))                # don't over-pad tiny problems
        tm = max(8, (tm // 8) * 8)
    else:
        tm = max(8, (int(tile_m) // 8) * 8)

    M_pad = _round_up(M, tm)                         # pad rows instead of
    n_m = M_pad // tm                                # requiring divisibility
    n_pad = M_pad - M

    xcol = jnp.pad(xcol, ((0, n_pad), (0, Kp - K)))  # [M_pad, Kp] (zero rows)

    out_padded = pl.pallas_call(
        functools.partial(convbn_relu_kernel, float(eps), float(M), float(n_pad)),
        out_shape=jax.ShapeDtypeStruct((M_pad, Cp), x.dtype),
        grid_spec=pltpu.PrefetchScalarGridSpec(
            num_scalar_prefetch=0,
            grid=(2, n_m),                                  # (phase, M tiles)
            in_specs=[
                pl.BlockSpec((tm, Kp), lambda p, m: (m, 0)),   # xcol tile (pipelined)
                pl.BlockSpec((Kp, Cp), lambda p, m: (0, 0)),   # weights (VMEM-resident)
                pl.BlockSpec((1, Cp), lambda p, m: (0, 0)),    # gamma
                pl.BlockSpec((1, Cp), lambda p, m: (0, 0)),    # beta
            ],
            # Phase 0 pins a single (never-stored) output block -> no zero
            # writeback during the stats pass; phase 1 walks the M tiles.
            out_specs=pl.BlockSpec((tm, Cp), lambda p, m: (m * p, 0)),
            scratch_shapes=[
                pltpu.VMEM((8, Cp), jnp.float32),   # s1 (centered sum, per sublane)
                pltpu.VMEM((8, Cp), jnp.float32),   # s2 (centered sum of squares)
                pltpu.VMEM((1, Cp), jnp.float32),   # pilot
                pltpu.VMEM((1, Cp), jnp.float32),   # scale
                pltpu.VMEM((1, Cp), jnp.float32),   # shift
            ]),
        # BN's global reduction couples all M tiles through one stats scratch
        # and the phase axis is inherently sequential -> both "arbitrary".
        compiler_params=pltpu.CompilerParams(
            dimension_semantics=("arbitrary", "arbitrary"),
            vmem_limit_bytes=int(vmem_limit)),
    )(xcol, wcol, gamma_p, beta_p)

    # ---- glue: drop row/channel padding, back to NCHW ----
    out = out_padded[:M, :Cout].reshape(N, OH, OW, Cout)
    return jnp.transpose(out, (0, 3, 1, 2))


def _reference(x, weight, bias, gamma, beta, *, stride, padding, eps=1e-5):
    """Plain-JAX reference (conv + training-mode BN + ReLU) for validation."""
    y = jax.lax.conv_general_dilated(
        x, weight, window_strides=(stride, stride),
        padding=[(padding, padding), (padding, padding)],
        dimension_numbers=("NCHW", "OIHW", "NCHW"),
    ) + bias.reshape(1, -1, 1, 1)
    mean = jnp.mean(y, axis=(0, 2, 3), keepdims=True)
    var = jnp.mean((y - mean) ** 2, axis=(0, 2, 3), keepdims=True)
    y = (y - mean) * jax.lax.rsqrt(var + eps)
    y = y * gamma.reshape(1, -1, 1, 1) + beta.reshape(1, -1, 1, 1)
    return jnp.maximum(y, 0.0)


if __name__ == "__main__":
    # ConvBlockBN(in_channels=4, out_channels=8, kernel_size=3, stride=1,
    #             padding=1, activation='relu')
    in_channels, out_channels, kernel_size, stride, padding = 4, 8, 3, 1, 1
    N, H, W = 2, 16, 16

    key = jax.random.PRNGKey(0)
    kx, kw, kb = jax.random.split(key, 3)

    x = jax.random.normal(kx, (N, in_channels, H, W), dtype=jnp.float32)

    # Deterministic parameter init matching PyTorch defaults:
    # Conv2d: kaiming_uniform(a=sqrt(5)) -> U(-1/sqrt(fan_in), 1/sqrt(fan_in))
    fan_in = in_channels * kernel_size * kernel_size
    bound = 1.0 / np.sqrt(fan_in)
    weight = jax.random.uniform(
        kw, (out_channels, in_channels, kernel_size, kernel_size),
        minval=-bound, maxval=bound, dtype=jnp.float32)
    bias = jax.random.uniform(kb, (out_channels,), minval=-bound, maxval=bound,
                              dtype=jnp.float32)
    # BatchNorm2d: weight=1, bias=0
    gamma = jnp.ones((out_channels,), dtype=jnp.float32)
    beta = jnp.zeros((out_channels,), dtype=jnp.float32)

    # tile_m=192 so the small demo (M = 2*16*16 = 512 -> M_pad = 576) exercises
    # the multi-tile two-phase grid *and* the padded-row stats correction; at
    # real sizes the generation-aware budget-derived tile (512-1024) is used.
    conv_fn = jax.jit(functools.partial(
        conv_block_bn, stride=stride, padding=padding, tile_m=192))

    out = conv_fn(x, weight, bias, gamma, beta)
    out = jax.block_until_ready(out)

    ref = _reference(x, weight, bias, gamma, beta, stride=stride, padding=padding)
    ref = jax.block_until_ready(ref)

    assert out.shape == (N, out_channels, H, W), out.shape
    assert jnp.allclose(out, ref, atol=1e-4, rtol=1e-4), (
        float(jnp.max(jnp.abs(out - ref))))

    print("KERNEL_OK")
</pallas_src>

<mosaic_0001>
module attributes {stable_mosaic.version = 11 : i64} {
  func.func @convbn_relu_kernel(%arg0: i32, %arg1: i32, %arg2: memref<192x40xf32, #tpu.memory_space<vmem>>, %arg3: memref<40x128xf32, #tpu.memory_space<vmem>>, %arg4: memref<1x128xf32, #tpu.memory_space<vmem>>, %arg5: memref<1x128xf32, #tpu.memory_space<vmem>>, %arg6: memref<192x128xf32, #tpu.memory_space<vmem>>, %arg7: memref<8x128xf32, #tpu.memory_space<vmem>>, %arg8: memref<8x128xf32, #tpu.memory_space<vmem>>, %arg9: memref<1x128xf32, #tpu.memory_space<vmem>>, %arg10: memref<1x128xf32, #tpu.memory_space<vmem>>, %arg11: memref<1x128xf32, #tpu.memory_space<vmem>>) attributes {dimension_semantics = [#tpu.dimension_semantics<arbitrary>, #tpu.dimension_semantics<arbitrary>], iteration_bounds = array<i64: 2, 3>, scalar_prefetch = 0 : i64, scratch_operands = 5 : i64, tpu.core_type = #tpu.core_type<tc>, window_params = [{transform_indices = @transform_0, window_bounds = array<i64: 192, 40>}, {pipeline_mode = #tpu.pipeline_mode<synchronous>, transform_indices = @transform_1, window_bounds = array<i64: 40, 128>}, {pipeline_mode = #tpu.pipeline_mode<synchronous>, transform_indices = @transform_2, window_bounds = array<i64: 1, 128>}, {pipeline_mode = #tpu.pipeline_mode<synchronous>, transform_indices = @transform_3, window_bounds = array<i64: 1, 128>}, {transform_indices = @transform_4, window_bounds = array<i64: 192, 128>}]} {
    %c0 = arith.constant 0 : index
    %c0_0 = arith.constant 0 : index
    %0 = vector.load %arg2[%c0, %c0_0] : memref<192x40xf32, #tpu.memory_space<vmem>>, vector<192x40xf32>
    %c0_1 = arith.constant 0 : index
    %c0_2 = arith.constant 0 : index
    %1 = vector.load %arg3[%c0_1, %c0_2] : memref<40x128xf32, #tpu.memory_space<vmem>>, vector<40x128xf32>
    %cst = arith.constant dense<0.000000e+00> : vector<192x128xf32>
    %2 = tpu.matmul %0, %1, %cst {dimension_numbers = #tpu.dot_dimension_numbers<[1], [0], [0], [1], [0, 0, 1, 1], [], []>} : vector<192x40xf32>, vector<40x128xf32>, vector<192x128xf32> -> vector<192x128xf32>
    %c0_i32 = arith.constant 0 : i32
    %3 = arith.cmpi eq, %arg0, %c0_i32 : i32
    %4 = arith.extui %3 : i1 to i32
    %c0_i32_3 = arith.constant 0 : i32
    %5 = arith.cmpi ne, %4, %c0_i32_3 : i32
    scf.if %5 {
      %c0_i32_5 = arith.constant 0 : i32
      %9 = arith.cmpi eq, %arg1, %c0_i32_5 : i32
      %10 = arith.extui %9 : i1 to i32
      %c0_i32_6 = arith.constant 0 : i32
      %11 = arith.cmpi ne, %10, %c0_i32_6 : i32
      scf.if %11 {
        %cst_20 = arith.constant 0.000000e+00 : f32
        %28 = vector.broadcast %cst_20 : f32 to vector<8x128xf32>
        %c0_21 = arith.constant 0 : index
        %c0_22 = arith.constant 0 : index
        %29 = vector.load %arg7[%c0_21, %c0_22] : memref<8x128xf32, #tpu.memory_space<vmem>>, vector<8x128xf32>
        tpu.vector_store %arg7[%c0_21, %c0_22], %28 {strides = array<i32>} : memref<8x128xf32, #tpu.memory_space<vmem>>, vector<8x128xf32>,
        %cst_23 = arith.constant 0.000000e+00 : f32
        %30 = vector.broadcast %cst_23 : f32 to vector<8x128xf32>
        %c0_24 = arith.constant 0 : index
        %c0_25 = arith.constant 0 : index
        %31 = vector.load %arg8[%c0_24, %c0_25] : memref<8x128xf32, #tpu.memory_space<vmem>>, vector<8x128xf32>
        tpu.vector_store %arg8[%c0_24, %c0_25], %30 {strides = array<i32>} : memref<8x128xf32, #tpu.memory_space<vmem>>, vector<8x128xf32>,
        %cst_26 = arith.constant dense<0.000000e+00> : vector<128xf32>
        %32 = vector.multi_reduction <add>, %2, %cst_26 [0] : vector<192x128xf32> to vector<128xf32>
        %33 = vector.shape_cast %32 : vector<128xf32> to vector<1x128xf32>
        %cst_27 = arith.constant 0.00520833349 : f32
        %34 = vector.broadcast %cst_27 : f32 to vector<1x128xf32>
        %35 = arith.mulf %33, %34 : vector<1x128xf32>
        %c0_28 = arith.constant 0 : index
        %c0_29 = arith.constant 0 : index
        %36 = vector.load %arg9[%c0_28, %c0_29] : memref<1x128xf32, #tpu.memory_space<vmem>>, vector<1x128xf32>
        tpu.vector_store %arg9[%c0_28, %c0_29], %35 {strides = array<i32>} : memref<1x128xf32, #tpu.memory_space<vmem>>, vector<1x128xf32>,
      } else {
      }
      %c0_7 = arith.constant 0 : index
      %c0_8 = arith.constant 0 : index
      %12 = vector.load %arg9[%c0_7, %c0_8] : memref<1x128xf32, #tpu.memory_space<vmem>>, vector<1x128xf32>
      %13 = vector.broadcast %12 : vector<1x128xf32> to vector<192x128xf32>
      %14 = arith.subf %2, %13 : vector<192x128xf32>
      %15 = vector.shape_cast %14 : vector<192x128xf32> to vector<24x8x128xf32>
      %c0_9 = arith.constant 0 : index
      %c0_10 = arith.constant 0 : index
      %16 = vector.load %arg7[%c0_9, %c0_10] : memref<8x128xf32, #tpu.memory_space<vmem>>, vector<8x128xf32>
      %cst_11 = arith.constant dense<0.000000e+00> : vector<8x128xf32>
      %17 = vector.multi_reduction <add>, %15, %cst_11 [0] : vector<24x8x128xf32> to vector<8x128xf32>
      %18 = arith.addf %16, %17 : vector<8x128xf32>
      %c0_12 = arith.constant 0 : index
      %c0_13 = arith.constant 0 : index
      %19 = vector.load %arg7[%c0_12, %c0_13] : memref<8x128xf32, #tpu.memory_space<vmem>>, vector<8x128xf32>
      tpu.vector_store %arg7[%c0_12, %c0_13], %18 {strides = array<i32>} : memref<8x128xf32, #tpu.memory_space<vmem>>, vector<8x128xf32>,
      %c0_14 = arith.constant 0 : index
      %c0_15 = arith.constant 0 : index
      %20 = vector.load %arg8[%c0_14, %c0_15] : memref<8x128xf32, #tpu.memory_space<vmem>>, vector<8x128xf32>
      %21 = arith.mulf %15, %15 : vector<24x8x128xf32>
      %cst_16 = arith.constant dense<0.000000e+00> : vector<8x128xf32>
      %22 = vector.multi_reduction <add>, %21, %cst_16 [0] : vector<24x8x128xf32> to vector<8x128xf32>
      %23 = arith.addf %20, %22 : vector<8x128xf32>
      %c0_17 = arith.constant 0 : index
      %c0_18 = arith.constant 0 : index
      %24 = vector.load %arg8[%c0_17, %c0_18] : memref<8x128xf32, #tpu.memory_space<vmem>>, vector<8x128xf32>
      tpu.vector_store %arg8[%c0_17, %c0_18], %23 {strides = array<i32>} : memref<8x128xf32, #tpu.memory_space<vmem>>, vector<8x128xf32>,
      %c2_i32 = arith.constant 2 : i32
      %25 = arith.cmpi eq, %arg1, %c2_i32 : i32
      %26 = arith.extui %25 : i1 to i32
      %c0_i32_19 = arith.constant 0 : i32
      %27 = arith.cmpi ne, %26, %c0_i32_19 : i32
      scf.if %27 {
        %c0_20 = arith.constant 0 : index
        %c0_21 = arith.constant 0 : index
        %28 = vector.load %arg9[%c0_20, %c0_21] : memref<1x128xf32, #tpu.memory_space<vmem>>, vector<1x128xf32>
        %c0_22 = arith.constant 0 : index
        %c0_23 = arith.constant 0 : index
        %29 = vector.load %arg7[%c0_22, %c0_23] : memref<8x128xf32, #tpu.memory_space<vmem>>, vector<8x128xf32>
        %cst_24 = arith.constant dense<0.000000e+00> : vector<128xf32>
        %30 = vector.multi_reduction <add>, %29, %cst_24 [0] : vector<8x128xf32> to vector<128xf32>
        %31 = vector.shape_cast %30 : vector<128xf32> to vector<1x128xf32>
        %cst_25 = arith.constant 6.400000e+01 : f32
        %32 = vector.broadcast %cst_25 : f32 to vector<1x128xf32>
        %33 = arith.mulf %32, %28 : vector<1x128xf32>
        %34 = arith.addf %31, %33 : vector<1x128xf32>
        %c0_26 = arith.constant 0 : index
        %c0_27 = arith.constant 0 : index
        %35 = vector.load %arg8[%c0_26, %c0_27] : memref<8x128xf32, #tpu.memory_space<vmem>>, vector<8x128xf32>
        %cst_28 = arith.constant dense<0.000000e+00> : vector<128xf32>
        %36 = vector.multi_reduction <add>, %35, %cst_28 [0] : vector<8x128xf32> to vector<128xf32>
        %37 = vector.shape_cast %36 : vector<128xf32> to vector<1x128xf32>
        %cst_29 = arith.constant 6.400000e+01 : f32
        %38 = vector.broadcast %cst_29 : f32 to vector<1x128xf32>
        %39 = arith.mulf %38, %28 : vector<1x128xf32>
        %40 = arith.mulf %39, %28 : vector<1x128xf32>
        %41 = arith.subf %37, %40 : vector<1x128xf32>
        %cst_30 = arith.constant 0.001953125 : f32
        %42 = vector.broadcast %cst_30 : f32 to vector<1x128xf32>
        %43 = arith.mulf %34, %42 : vector<1x128xf32>
        %44 = arith.addf %28, %43 : vector<1x128xf32>
        %cst_31 = arith.constant 0.001953125 : f32
        %45 = vector.broadcast %cst_31 : f32 to vector<1x128xf32>
        %46 = arith.mulf %41, %45 : vector<1x128xf32>
        %47 = arith.mulf %43, %43 : vector<1x128xf32>
        %48 = arith.subf %46, %47 : vector<1x128xf32>
        %cst_32 = arith.constant 0.000000e+00 : f32
        %49 = vector.broadcast %cst_32 : f32 to vector<1x128xf32>
        %50 = arith.maximumf %48, %49 : vector<1x128xf32>
        %c0_33 = arith.constant 0 : index
        %c0_34 = arith.constant 0 : index
        %51 = vector.load %arg4[%c0_33, %c0_34] : memref<1x128xf32, #tpu.memory_space<vmem>>, vector<1x128xf32>
        %cst_35 = arith.constant 9.99999974E-6 : f32
        %52 = vector.broadcast %cst_35 : f32 to vector<1x128xf32>
        %53 = arith.addf %50, %52 : vector<1x128xf32>
        %54 = math.rsqrt %53 : vector<1x128xf32>
        %55 = arith.mulf %51, %54 : vector<1x128xf32>
        %c0_36 = arith.constant 0 : index
        %c0_37 = arith.constant 0 : index
        %56 = vector.load %arg10[%c0_36, %c0_37] : memref<1x128xf32, #tpu.memory_space<vmem>>, vector<1x128xf32>
        tpu.vector_store %arg10[%c0_36, %c0_37], %55 {strides = array<i32>} : memref<1x128xf32, #tpu.memory_space<vmem>>, vector<1x128xf32>,
        %c0_38 = arith.constant 0 : index
        %c0_39 = arith.constant 0 : index
        %57 = vector.load %arg5[%c0_38, %c0_39] : memref<1x128xf32, #tpu.memory_space<vmem>>, vector<1x128xf32>
        %58 = arith.mulf %44, %55 : vector<1x128xf32>
        %59 = arith.subf %57, %58 : vector<1x128xf32>
        %c0_40 = arith.constant 0 : index
        %c0_41 = arith.constant 0 : index
        %60 = vector.load %arg11[%c0_40, %c0_41] : memref<1x128xf32, #tpu.memory_space<vmem>>, vector<1x128xf32>
        tpu.vector_store %arg11[%c0_40, %c0_41], %59 {strides = array<i32>} : memref<1x128xf32, #tpu.memory_space<vmem>>, vector<1x128xf32>,
      } else {
      }
    } else {
    }
    %c1_i32 = arith.constant 1 : i32
    %6 = arith.cmpi eq, %arg0, %c1_i32 : i32
    %7 = arith.extui %6 : i1 to i32
    %c0_i32_4 = arith.constant 0 : i32
    %8 = arith.cmpi ne, %7, %c0_i32_4 : i32
    scf.if %8 {
      %c0_5 = arith.constant 0 : index
      %c0_6 = arith.constant 0 : index
      %9 = vector.load %arg10[%c0_5, %c0_6] : memref<1x128xf32, #tpu.memory_space<vmem>>, vector<1x128xf32>
      %10 = vector.broadcast %9 : vector<1x128xf32> to vector<192x128xf32>
      %11 = arith.mulf %2, %10 : vector<192x128xf32>
      %c0_7 = arith.constant 0 : index
      %c0_8 = arith.constant 0 : index
      %12 = vector.load %arg11[%c0_7, %c0_8] : memref<1x128xf32, #tpu.memory_space<vmem>>, vector<1x128xf32>
      %13 = vector.broadcast %12 : vector<1x128xf32> to vector<192x128xf32>
      %14 = arith.addf %11, %13 : vector<192x128xf32>
      %cst_9 = arith.constant 0.000000e+00 : f32
      %15 = vector.broadcast %cst_9 : f32 to vector<192x128xf32>
      %16 = arith.maximumf %14, %15 : vector<192x128xf32>
      %c0_10 = arith.constant 0 : index
      %c0_11 = arith.constant 0 : index
      %17 = vector.load %arg6[%c0_10, %c0_11] : memref<192x128xf32, #tpu.memory_space<vmem>>, vector<192x128xf32>
      tpu.vector_store %arg6[%c0_10, %c0_11], %16 {strides = array<i32>} : memref<192x128xf32, #tpu.memory_space<vmem>>, vector<192x128xf32>,
    } else {
    }
    return
  }
  func.func @transform_0(%arg0: i32, %arg1: i32) -> (i32, i32) {
    %c0_i32 = arith.constant 0 : i32
    %c0_i32_0 = arith.constant 0 : i32
    return %arg1, %c0_i32 : i32, i32
  }
  func.func @transform_1(%arg0: i32, %arg1: i32) -> (i32, i32) {
    %c0_i32 = arith.constant 0 : i32
    %c0_i32_0 = arith.constant 0 : i32
    %c0_i32_1 = arith.constant 0 : i32
    return %c0_i32, %c0_i32_0 : i32, i32
  }
  func.func @transform_2(%arg0: i32, %arg1: i32) -> (i32, i32) {
    %c0_i32 = arith.constant 0 : i32
    %c0_i32_0 = arith.constant 0 : i32
    %c0_i32_1 = arith.constant 0 : i32
    return %c0_i32, %c0_i32_0 : i32, i32
  }
  func.func @transform_3(%arg0: i32, %arg1: i32) -> (i32, i32) {
    %c0_i32 = arith.constant 0 : i32
    %c0_i32_0 = arith.constant 0 : i32
    %c0_i32_1 = arith.constant 0 : i32
    return %c0_i32, %c0_i32_0 : i32, i32
  }
  func.func @transform_4(%arg0: i32, %arg1: i32) -> (i32, i32) {
    %0 = arith.muli %arg1, %arg0 : i32
    %c0_i32 = arith.constant 0 : i32
    %c0_i32_0 = arith.constant 0 : i32
    return %0, %c0_i32 : i32, i32
  }
}

</mosaic_0001>

<llo_original>
// kernel: conv_block_bn.1
$region0: #{conv_block_bn.1}
  #allocation0 [shape = 'u32[]', space=smem, size = 0x4, offset = 0x4, fixed_abs, tag = 'smem constant byte address 0x4 - core index']
  #allocation1 [shape = 'u32[144,128]{1,0:T(1,128)}', space=vmem, size = 0x12000, scoped, tag = 'internal scratch']
  #allocation2 [shape = 'f32[8,128]{1,0:T(8,128)}', space=vmem, size = 0x1000, scoped, tag = 'scratch operand']
  #allocation3 [shape = 'f32[8,128]{1,0:T(8,128)}', space=vmem, size = 0x1000, scoped, tag = 'scratch operand']
  #allocation4 [shape = 'f32[1,128]{1,0:T(1,128)}', space=vmem, size = 0x200, scoped, tag = 'scratch operand']
  #allocation5 [shape = 'f32[1,128]{1,0:T(1,128)}', space=vmem, size = 0x200, scoped, tag = 'scratch operand']
  #allocation6 [shape = 'f32[1,128]{1,0:T(1,128)}', space=vmem, size = 0x200, scoped, tag = 'scratch operand']
  %s0 = inlined_call_operand.vmem [shape: f32[576,40], index: 0, kind: input, shape index: {}]
  %s1 = inlined_call_operand.vmem [shape: f32[40,128], index: 1, kind: input, shape index: {}]
  %s2 = inlined_call_operand.vmem [shape: f32[1,128], index: 2, kind: input, shape index: {}]
  %s3 = inlined_call_operand.vmem [shape: f32[1,128], index: 3, kind: input, shape index: {}]
  %s4 = inlined_call_operand.vmem [shape: f32[576,128], index: 4, kind: output, shape index: {}]
  %s5 = sld [smem:[#allocation0]]
  $region65: #{conv_block_bn.1} parent=0
    _
  %s7 = ssub.s32 1, %s5
  %s8 = scalar_select 0, %s7, %s5
  loop: start=0, step=1, limit=8
  $region2: #{conv_block_bn.1} parent=0 // loop_pre_header
    _
  $region3: #{conv_block_bn.1} parent=0 // loop_header
    %s10 = sphi 0, %s14
    %p11 = scmp.ge.s32.totalorder %s10, 8
    %s17 = sphi 0, %s29
    %s18 = sphi 0, %s25
    %s19 = sphi 0, %s17
    %s20 = sphi 0, %s18
    %s21 = sphi 0, %s19
    %s22 = sphi 0, %s20
    %s32 = sphi 0, %s34
    %s35 = sphi 0, %s32
    %s36 = sphi 0, %s35
    %s52 = sphi 0, %s36
    %s56 = sphi 0, %s56
    %s58 = sphi 0, %s56
    %s59 = sphi 0, %s58
    %s73 = sphi 0, %s59
    %s77 = sphi 0, %s77
    %s79 = sphi 0, %s77
    %s80 = sphi 0, %s79
    %s94 = sphi 0, %s80
    %s98 = sphi 0, %s98
    %s100 = sphi 0, %s98
    %s101 = sphi 0, %s100
    %s115 = sphi 0, %s101
    %s123 = sphi 0, %s125
    %s126 = sphi 0, %s123
    %s127 = sphi 0, %s126
    %s143 = sphi 0, %s127
  $region4: #{conv_block_bn.1} parent=0 // loop_header_branch
    %13 = sbr.rel (%p11) target = $region8
  $region5: #{conv_block_bn.1} parent=0 // loop_body
    %s15 = ssub.s32 %s10, 1
    %s16 = ssub.s32 %s10, 2
    %s23 = sadd.s32 1, %s18
    %p24 = scmp.ge.s32.totalorder %s23, 3
    %s25 = scalar_select %p24, 0, %s23
    %s26 = sadd.s32 1, %s17
    %s27 = scalar_select %p24, %s26, %s17
    %p28 = scmp.ge.s32.totalorder %s27, 2
    %s29 = scalar_select %p28, 0, %s27
    %s30 = ssub.s32 %s18, %s25
    %p31 = scmp.eq.s32.totalorder %s30, 0
    %s33 = sadd.s32 %s32, 1
    %s34 = scalar_select %p31, %s32, %s33
    %p37 = pneg %p31
    %p38 = scmp.eq.s32.totalorder %s10, 5
    %p39 = por %p37, %p38
    %p40 = scmp.ne.s32.totalorder %s32, %s35
    %p41 = scmp.eq.s32.totalorder %s10, 0
    %p42 = por %p40, %p41
    %p43 = scmp.ne.s32.totalorder %s32, %s35
    %p44 = scmp.eq.s32.totalorder %s15, 5
    %p45 = por %p43, %p44
    %p46 = scmp.ne.s32.totalorder %s35, %s36
    %p47 = scmp.eq.s32.totalorder %s15, 0
    %p48 = por %p46, %p47
    %p49 = scmp.ne.s32.totalorder %s35, %s36
    %p50 = scmp.eq.s32.totalorder %s16, 5
    %p51 = por %p49, %p50
    %p53 = scmp.ne.s32.totalorder %s36, %s52
    %p54 = scmp.eq.s32.totalorder %s16, 0
    %p55 = por %p53, %p54
    %s57 = sadd.s32 %s56, 1
    %p60 = scmp.eq.s32.totalorder %s10, 5
    %p61 = scmp.ne.s32.totalorder %s56, %s58
    %p62 = scmp.eq.s32.totalorder %s10, 0
    %p63 = por %p61, %p62
    %p64 = scmp.ne.s32.totalorder %s56, %s58
    %p65 = scmp.eq.s32.totalorder %s15, 5
    %p66 = por %p64, %p65
    %p67 = scmp.ne.s32.totalorder %s58, %s59
    %p68 = scmp.eq.s32.totalorder %s15, 0
    %p69 = por %p67, %p68
    %p70 = scmp.ne.s32.totalorder %s58, %s59
    %p71 = scmp.eq.s32.totalorder %s16, 5
    %p72 = por %p70, %p71
    %p74 = scmp.ne.s32.totalorder %s59, %s73
    %p75 = scmp.eq.s32.totalorder %s16, 0
    %p76 = por %p74, %p75
    %s78 = sadd.s32 %s77, 1
    %p81 = scmp.eq.s32.totalorder %s10, 5
    %p82 = scmp.ne.s32.totalorder %s77, %s79
    %p83 = scmp.eq.s32.totalorder %s10, 0
    %p84 = por %p82, %p83
    %p85 = scmp.ne.s32.totalorder %s77, %s79
    %p86 = scmp.eq.s32.totalorder %s15, 5
    %p87 = por %p85, %p86
    %p88 = scmp.ne.s32.totalorder %s79, %s80
    %p89 = scmp.eq.s32.totalorder %s15, 0
    %p90 = por %p88, %p89
    %p91 = scmp.ne.s32.totalorder %s79, %s80
    %p92 = scmp.eq.s32.totalorder %s16, 5
    %p93 = por %p91, %p92
    %p95 = scmp.ne.s32.totalorder %s80, %s94
    %p96 = scmp.eq.s32.totalorder %s16, 0
    %p97 = por %p95, %p96
    %s99 = sadd.s32 %s98, 1
    %p102 = scmp.eq.s32.totalorder %s10, 5
    %p103 = scmp.ne.s32.totalorder %s98, %s100
    %p104 = scmp.eq.s32.totalorder %s10, 0
    %p105 = por %p103, %p104
    %p106 = scmp.ne.s32.totalorder %s98, %s100
    %p107 = scmp.eq.s32.totalorder %s15, 5
    %p108 = por %p106, %p107
    %p109 = scmp.ne.s32.totalorder %s100, %s101
    %p110 = scmp.eq.s32.totalorder %s15, 0
    %p111 = por %p109, %p110
    %p112 = scmp.ne.s32.totalorder %s100, %s101
    %p113 = scmp.eq.s32.totalorder %s16, 5
    %p114 = por %p112, %p113
    %p116 = scmp.ne.s32.totalorder %s101, %s115
    %p117 = scmp.eq.s32.totalorder %s16, 0
    %p118 = por %p116, %p117
    %s119 = smul.u32 %s18, %s17
    %s120 = smul.u32 %s25, %s29
    %s121 = ssub.s32 %s119, %s120
    %p122 = scmp.eq.s32.totalorder %s121, 0
    %s124 = sadd.s32 %s123, 1
    %s125 = scalar_select %p122, %s123, %s124
    %p128 = pneg %p122
    %p129 = scmp.eq.s32.totalorder %s10, 5
    %p130 = por %p128, %p129
    %p131 = scmp.ne.s32.totalorder %s123, %s126
    %p132 = scmp.eq.s32.totalorder %s10, 0
    %p133 = por %p131, %p132
    %p134 = scmp.ne.s32.totalorder %s123, %s126
    %p135 = scmp.eq.s32.totalorder %s15, 5
    %p136 = por %p134, %p135
    %p137 = scmp.ne.s32.totalorder %s126, %s127
    %p138 = scmp.eq.s32.totalorder %s15, 0
    %p139 = por %p137, %p138
    %p140 = scmp.ne.s32.totalorder %s126, %s127
    %p141 = scmp.eq.s32.totalorder %s16, 5
    %p142 = por %p140, %p141
    %p144 = scmp.ne.s32.totalorder %s127, %s143
    %p145 = scmp.eq.s32.totalorder %s16, 0
    %p146 = por %p144, %p145
    %p147 = scmp.le.s32.totalorder 1, %s10
    %p148 = scmp.lt.s32.totalorder %s10, 7
    %p149 = pnand %p147, %p148
    %p150 = pneg %p149
    // Predicated region
    $region9: #{conv_block_bn.1} parent=5 // pred_check
      _
    $region10: #{conv_block_bn.1} parent=5 // pred_check_branch
      %152 = sbr.rel (%p149) target = $region12
    $region11: #{conv_block_bn.1} parent=5 // pred_region
      %s153 = ssub.s32 %s10, 1
      // Predicated region
      $region13: #{conv_block_bn.1} parent=11 // pred_check
        %p154 = pneg %p69
      $region14: #{conv_block_bn.1} parent=11 // pred_check_branch
        %156 = sbr.rel (%p154) target = $region16
      $region15: #{conv_block_bn.1} parent=11 // pred_region
        _
      $region16: #{conv_block_bn.1} parent=11 // pred_fallthru
        _
      // Predicated region
      $region17: #{conv_block_bn.1} parent=11 // pred_check
        %p157 = pneg %p90
      $region18: #{conv_block_bn.1} parent=11 // pred_check_branch
        %159 = sbr.rel (%p157) target = $region20
      $region19: #{conv_block_bn.1} parent=11 // pred_region
        _
      $region20: #{conv_block_bn.1} parent=11 // pred_fallthru
        _
      // Predicated region
      $region21: #{conv_block_bn.1} parent=11 // pred_check
        %p160 = pneg %p111
      $region22: #{conv_block_bn.1} parent=11 // pred_check_branch
        %162 = sbr.rel (%p160) target = $region24
      $region23: #{conv_block_bn.1} parent=11 // pred_region
        _
      $region24: #{conv_block_bn.1} parent=11 // pred_fallthru
        _
    $region12: #{conv_block_bn.1} parent=5 // pred_fallthru
      _
    %p163 = scmp.lt.s32.totalorder %s10, 6
    // Predicated region
    $region25: #{conv_block_bn.1} parent=5 // pred_check
      %p164 = pneg %p163
    $region26: #{conv_block_bn.1} parent=5 // pred_check_branch
      %166 = sbr.rel (%p164) target = $region28
    $region27: #{conv_block_bn.1} parent=5 // pred_region
      // Predicated region
      $region29: #{conv_block_bn.1} parent=27 // pred_check
        %p167 = pneg %p42
      $region30: #{conv_block_bn.1} parent=27 // pred_check_branch
        %169 = sbr.rel (%p167) target = $region32
      $region31: #{conv_block_bn.1} parent=27 // pred_region
        %s170 = smul.u32 24, %s18
        %p171 = scmp.lt.s32.totalorder %s170, 71
        %s172 = scalar_select %p171, %s170, 71
        %s173 = smul.addr %s172, 8
        %s174 = scalar_lea.vmem %s0, %s173
        %s175 = smul.u32 24, %s18
      $region32: #{conv_block_bn.1} parent=27 // pred_fallthru
        _
    $region28: #{conv_block_bn.1} parent=5 // pred_fallthru
      _
    %p176 = scmp.le.s32.totalorder 1, %s10
    %p177 = scmp.lt.s32.totalorder %s10, 7
    %p178 = pnand %p176, %p177
    %p179 = pneg %p178
    // Predicated region
    $region33: #{conv_block_bn.1} parent=5 // pred_check
      _
    $region34: #{conv_block_bn.1} parent=5 // pred_check_branch
      %181 = sbr.rel (%p178) target = $region36
    $region35: #{conv_block_bn.1} parent=5 // pred_region
      %s182 = ssub.s32 %s10, 1
      %s183 = smul.u32 24, %s20
      %p184 = scmp.lt.s32.totalorder %s183, 71
      %s185 = scalar_select %p184, %s183, 71
      %s186 = smul.addr %s185, 8
      %s187 = scalar_lea.vmem %s0, %s186
      %p188 = pneg %p48
      %p189 = pneg %p45
      %p190 = pneg %p69
      %p191 = pneg %p66
      %p192 = pneg %p90
      %p193 = pneg %p87
      %p194 = pneg %p111
      %p195 = pneg %p108
      %p196 = pneg %p139
      %p197 = pneg %p136
      %s198 = smul.u32 %s20, %s19
      %s199 = smul.u32 24, %s198
      %p200 = scmp.lt.s32.totalorder %s199, 71
      %s201 = scalar_select %p200, %s199, 71
      %s202 = smul.addr %s201, 8
      %s203 = scalar_lea.vmem %s4, %s202
      %s204 = smul.u32 24, %s20
      %p205 = scmp.lt.s32.totalorder %s204, 71
      %s206 = scalar_select %p205, %s204, 71
      %s207 = smul.addr %s206, 8
      %s208 = scalar_lea.vmem %s0, %s207
      %s209 = smul.u32 24, %s20
      %s210 = smul.u32 %s20, %s19
      %s211 = smul.u32 24, %s210
      %p212 = scmp.lt.s32.totalorder %s211, 71
      %s213 = scalar_select %p212, %s211, 71
      %s214 = smul.addr %s213, 8
      %s215 = scalar_lea.vmem %s4, %s214
      %s216 = smul.u32 %s20, %s19
      %s217 = smul.u32 24, %s216
      %v218 = vld [vmem:[%s208] sm:$0xff]
      %v219 = vld [vmem:[%s208 + $0x8] sm:$0xff]
      %v220 = vld [vmem:[%s208 + $0x10] sm:$0xff]
      %v221 = vld [vmem:[%s208 + $0x18] sm:$0xff]
      %v222 = vld [vmem:[%s208 + $0x20] sm:$0xff]
      %v223 = vld [vmem:[%s208 + $0x28] sm:$0xff]
      %v224 = vld [vmem:[%s208 + $0x30] sm:$0xff]
      %v225 = vld [vmem:[%s208 + $0x38] sm:$0xff]
      %v226 = vld [vmem:[%s208 + $0x40] sm:$0xff]
      %v227 = vld [vmem:[%s208 + $0x48] sm:$0xff]
      %v228 = vld [vmem:[%s208 + $0x50] sm:$0xff]
      %v229 = vld [vmem:[%s208 + $0x58] sm:$0xff]
      %v230 = vld [vmem:[%s208 + $0x60] sm:$0xff]
      %v231 = vld [vmem:[%s208 + $0x68] sm:$0xff]
      %v232 = vld [vmem:[%s208 + $0x70] sm:$0xff]
      %v233 = vld [vmem:[%s208 + $0x78] sm:$0xff]
      %v234 = vld [vmem:[%s208 + $0x80] sm:$0xff]
      %v235 = vld [vmem:[%s208 + $0x88] sm:$0xff]
      %v236 = vld [vmem:[%s208 + $0x90] sm:$0xff]
      %v237 = vld [vmem:[%s208 + $0x98] sm:$0xff]
      %v238 = vld [vmem:[%s208 + $0xa0] sm:$0xff]
      %v239 = vld [vmem:[%s208 + $0xa8] sm:$0xff]
      %v240 = vld [vmem:[%s208 + $0xb0] sm:$0xff]
      %v241 = vld [vmem:[%s208 + $0xb8] sm:$0xff]
      %v242 = vld [vmem:[%s1] sm:$0xff]
      %v243 = vld [vmem:[%s1 + $0x8] sm:$0xff]
      %v244 = vld [vmem:[%s1 + $0x10] sm:$0xff]
      %v245 = vld [vmem:[%s1 + $0x18] sm:$0xff]
      %v246 = vld [vmem:[%s1 + $0x20] sm:$0xff]
      %vm247 = vcmask 326656
      %v249 = vsel %vm247, %v218, 0
      %v252 = vsel %vm247, %v219, 0
      %v255 = vsel %vm247, %v220, 0
      %v258 = vsel %vm247, %v221, 0
      %v261 = vsel %vm247, %v222, 0
      %v264 = vsel %vm247, %v223, 0
      %v267 = vsel %vm247, %v224, 0
      %v270 = vsel %vm247, %v225, 0
      %v273 = vsel %vm247, %v226, 0
      %v276 = vsel %vm247, %v227, 0
      %v279 = vsel %vm247, %v228, 0
      %v282 = vsel %vm247, %v229, 0
      %v285 = vsel %vm247, %v230, 0
      %v288 = vsel %vm247, %v231, 0
      %v291 = vsel %vm247, %v232, 0
      %v294 = vsel %vm247, %v233, 0
      %v297 = vsel %vm247, %v234, 0
      %v300 = vsel %vm247, %v235, 0
      %v303 = vsel %vm247, %v236, 0
      %v306 = vsel %vm247, %v237, 0
      %v309 = vsel %vm247, %v238, 0
      %v312 = vsel %vm247, %v239, 0
      %v315 = vsel %vm247, %v240, 0
      %v318 = vsel %vm247, %v241, 0
      %320 = vmatprep.subr.mxu0 0.0
      %321 = vmatpush1.msra.mxu0 %v242
      %322 = vmatprep.subr.mxu0 0.0
      %323 = vmatpush1.msra.mxu0 %v243
      %324 = vmatprep.subr.mxu0 0.0
      %325 = vmatpush1.msra.mxu0 %v244
      %326 = vmatprep.subr.mxu0 0.0
      %327 = vmatpush1.msra.mxu0 %v245
      %328 = vmatprep.subr.mxu0 0.0
      %329 = vmatpush1.msra.mxu0 %v246
      %330 = vmatprep.subr.mxu0 0.0
      %331 = vmatpush1.msra.mxu0 0.0
      %332 = vmatprep.subr.mxu0 0.0
      %333 = vmatpush1.msra.mxu0 0.0
      %334 = vmatprep.subr.mxu0 0.0
      %335 = vmatpush1.msra.mxu0 0.0
      %336 = vmatprep.subr.mxu0 0.0
      %337 = vmatpush1.msra.mxu0 0.0
      %338 = vmatprep.subr.mxu0 0.0
      %339 = vmatpush1.msra.mxu0 0.0
      %340 = vmatprep.subr.mxu0 0.0
      %341 = vmatpush1.msra.mxu0 0.0
      %342 = vmatprep.subr.mxu0 0.0
      %343 = vmatpush1.msra.mxu0 0.0
      %344 = vmatprep.subr.mxu0 0.0
      %345 = vmatpush1.msra.mxu0 0.0
      %346 = vmatprep.subr.mxu0 0.0
      %347 = vmatpush1.msra.mxu0 0.0
      %348 = vmatprep.subr.mxu0 0.0
      %349 = vmatpush1.msra.mxu0 0.0
      %350 = vmatprep.subr.mxu0 0.0
      %351 = vmatpush1.msra.mxu0 0.0
      %352 = vmatprep.subr.mxu0 0.0
      %353 = vmatpush1.msra.mxu0 0.0
      %354 = vmatprep.subr.mxu0 0.0
      %355 = vmatpush1.msra.mxu0 0.0
      %356 = vmatprep.subr.mxu0 0.0
      %357 = vmatpush1.msra.mxu0 0.0
      %358 = vmatprep.subr.mxu0 0.0
      %359 = vmatpush1.msra.mxu0 0.0
      %360 = vmatprep.subr.mxu0 0.0
      %361 = vmatpush1.msra.mxu0 0.0
      %362 = vmatprep.subr.mxu0 0.0
      %363 = vmatpush1.msra.mxu0 0.0
      %364 = vmatprep.subr.mxu0 0.0
      %365 = vmatpush1.msra.mxu0 0.0
      %366 = vmatprep.subr.mxu0 0.0
      %367 = vmatpush1.msra.mxu0 0.0
      %368 = vmatprep.subr.mxu0 0.0
      %369 = vmatpush1.msra.mxu0 0.0
      %370 = vmatprep.subr.mxu0 0.0
      %371 = vmatpush1.msra.mxu0 0.0
      %372 = vmatprep.subr.mxu0 0.0
      %373 = vmatpush1.msra.mxu0 0.0
      %374 = vmatprep.subr.mxu0 0.0
      %375 = vmatpush1.msra.mxu0 0.0
      %376 = vmatprep.subr.mxu0 0.0
      %377 = vmatpush1.msra.mxu0 0.0
      %378 = vmatprep.subr.mxu0 0.0
      %379 = vmatpush1.msra.mxu0 0.0
      %380 = vmatprep.subr.mxu0 0.0
      %381 = vmatpush1.msra.mxu0 0.0
      %382 = vmatprep.subr.mxu0 0.0
      %383 = vmatpush1.msra.mxu0 0.0
      %384 = vmatprep.mubr.f32.mxu0 0.0
      %385 = vmatmul.mubr.f32.gmra.mrb[0].mxu0 %v249
      %v386 = vpop.f32.mrb[0].mxu0
      %v387 = vadd.f32 0.0, %v386
      %v388 = vpop.f32.mrb[0].mxu0
      %389 = vmatprep.mubr.f32.mxu0 0.0
      %390 = vmatmul.mubr.f32.gmra.mrb[0].mxu0 %v252
      %v391 = vpop.f32.mrb[0].mxu0
      %v392 = vadd.f32 0.0, %v391
      %v393 = vpop.f32.mrb[0].mxu0
      %394 = vmatprep.mubr.f32.mxu0 0.0
      %395 = vmatmul.mubr.f32.gmra.mrb[0].mxu0 %v255
      %v396 = vpop.f32.mrb[0].mxu0
      %v397 = vadd.f32 0.0, %v396
      %v398 = vpop.f32.mrb[0].mxu0
      %399 = vmatprep.mubr.f32.mxu0 0.0
      %400 = vmatmul.mubr.f32.gmra.mrb[0].mxu0 %v258
      %v401 = vpop.f32.mrb[0].mxu0
      %v402 = vadd.f32 0.0, %v401
      %v403 = vpop.f32.mrb[0].mxu0
      %404 = vmatprep.mubr.f32.mxu0 0.0
      %405 = vmatmul.mubr.f32.gmra.mrb[0].mxu0 %v261
      %v406 = vpop.f32.mrb[0].mxu0
      %v407 = vadd.f32 0.0, %v406
      %v408 = vpop.f32.mrb[0].mxu0
      %409 = vmatprep.mubr.f32.mxu0 0.0
      %410 = vmatmul.mubr.f32.gmra.mrb[0].mxu0 %v264
      %v411 = vpop.f32.mrb[0].mxu0
      %v412 = vadd.f32 0.0, %v411
      %v413 = vpop.f32.mrb[0].mxu0
      %414 = vmatprep.mubr.f32.mxu0 0.0
      %415 = vmatmul.mubr.f32.gmra.mrb[0].mxu0 %v267
      %v416 = vpop.f32.mrb[0].mxu0
      %v417 = vadd.f32 0.0, %v416
      %v418 = vpop.f32.mrb[0].mxu0
      %419 = vmatprep.mubr.f32.mxu0 0.0
      %420 = vmatmul.mubr.f32.gmra.mrb[0].mxu0 %v270
      %v421 = vpop.f32.mrb[0].mxu0
      %v422 = vadd.f32 0.0, %v421
      %v423 = vpop.f32.mrb[0].mxu0
      %424 = vmatprep.mubr.f32.mxu0 0.0
      %425 = vmatmul.mubr.f32.gmra.mrb[0].mxu0 %v273
      %v426 = vpop.f32.mrb[0].mxu0
      %v427 = vadd.f32 0.0, %v426
      %v428 = vpop.f32.mrb[0].mxu0
      %429 = vmatprep.mubr.f32.mxu0 0.0
      %430 = vmatmul.mubr.f32.gmra.mrb[0].mxu0 %v276
      %v431 = vpop.f32.mrb[0].mxu0
      %v432 = vadd.f32 0.0, %v431
      %v433 = vpop.f32.mrb[0].mxu0
      %434 = vmatprep.mubr.f32.mxu0 0.0
      %435 = vmatmul.mubr.f32.gmra.mrb[0].mxu0 %v279
      %v436 = vpop.f32.mrb[0].mxu0
      %v437 = vadd.f32 0.0, %v436
      %v438 = vpop.f32.mrb[0].mxu0
      %439 = vmatprep.mubr.f32.mxu0 0.0
      %440 = vmatmul.mubr.f32.gmra.mrb[0].mxu0 %v282
      %v441 = vpop.f32.mrb[0].mxu0
      %v442 = vadd.f32 0.0, %v441
      %v443 = vpop.f32.mrb[0].mxu0
      %444 = vmatprep.mubr.f32.mxu0 0.0
      %445 = vmatmul.mubr.f32.gmra.mrb[0].mxu0 %v285
      %v446 = vpop.f32.mrb[0].mxu0
      %v447 = vadd.f32 0.0, %v446
      %v448 = vpop.f32.mrb[0].mxu0
      %449 = vmatprep.mubr.f32.mxu0 0.0
      %450 = vmatmul.mubr.f32.gmra.mrb[0].mxu0 %v288
      %v451 = vpop.f32.mrb[0].mxu0
      %v452 = vadd.f32 0.0, %v451
      %v453 = vpop.f32.mrb[0].mxu0
      %454 = vmatprep.mubr.f32.mxu0 0.0
      %455 = vmatmul.mubr.f32.gmra.mrb[0].mxu0 %v291
      %v456 = vpop.f32.mrb[0].mxu0
      %v457 = vadd.f32 0.0, %v456
      %v458 = vpop.f32.mrb[0].mxu0
      %459 = vmatprep.mubr.f32.mxu0 0.0
      %460 = vmatmul.mubr.f32.gmra.mrb[0].mxu0 %v294
      %v461 = vpop.f32.mrb[0].mxu0
      %v462 = vadd.f32 0.0, %v461
      %v463 = vpop.f32.mrb[0].mxu0
      %464 = vmatprep.mubr.f32.mxu0 0.0
      %465 = vmatmul.mubr.f32.gmra.mrb[0].mxu0 %v297
      %v466 = vpop.f32.mrb[0].mxu0
      %v467 = vadd.f32 0.0, %v466
      %v468 = vpop.f32.mrb[0].mxu0
      %469 = vmatprep.mubr.f32.mxu0 0.0
      %470 = vmatmul.mubr.f32.gmra.mrb[0].mxu0 %v300
      %v471 = vpop.f32.mrb[0].mxu0
      %v472 = vadd.f32 0.0, %v471
      %v473 = vpop.f32.mrb[0].mxu0
      %474 = vmatprep.mubr.f32.mxu0 0.0
      %475 = vmatmul.mubr.f32.gmra.mrb[0].mxu0 %v303
      %v476 = vpop.f32.mrb[0].mxu0
      %v477 = vadd.f32 0.0, %v476
      %v478 = vpop.f32.mrb[0].mxu0
      %479 = vmatprep.mubr.f32.mxu0 0.0
      %480 = vmatmul.mubr.f32.gmra.mrb[0].mxu0 %v306
      %v481 = vpop.f32.mrb[0].mxu0
      %v482 = vadd.f32 0.0, %v481
      %v483 = vpop.f32.mrb[0].mxu0
      %484 = vmatprep.mubr.f32.mxu0 0.0
      %485 = vmatmul.mubr.f32.gmra.mrb[0].mxu0 %v309
      %v486 = vpop.f32.mrb[0].mxu0
      %v487 = vadd.f32 0.0, %v486
      %v488 = vpop.f32.mrb[0].mxu0
      %489 = vmatprep.mubr.f32.mxu0 0.0
      %490 = vmatmul.mubr.f32.gmra.mrb[0].mxu0 %v312
      %v491 = vpop.f32.mrb[0].mxu0
      %v492 = vadd.f32 0.0, %v491
      %v493 = vpop.f32.mrb[0].mxu0
      %494 = vmatprep.mubr.f32.mxu0 0.0
      %495 = vmatmul.mubr.f32.gmra.mrb[0].mxu0 %v315
      %v496 = vpop.f32.mrb[0].mxu0
      %v497 = vadd.f32 0.0, %v496
      %v498 = vpop.f32.mrb[0].mxu0
      %499 = vmatprep.mubr.f32.mxu0 0.0
      %500 = vmatmul.mubr.f32.gmra.mrb[0].mxu0 %v318
      %v501 = vpop.f32.mrb[0].mxu0
      %v502 = vadd.f32 0.0, %v501
      %v503 = vpop.f32.mrb[0].mxu0
      %504 = vdwg.mxu0
      %p505 = scmp.eq.s32.totalorder %s19, 0
      // Predicated region
      $region37: #{conv_block_bn.1} parent=35 // pred_check
        %p506 = pneg %p505
      $region38: #{conv_block_bn.1} parent=35 // pred_check_branch
        %508 = sbr.rel (%p506) target = $region40
      $region39: #{conv_block_bn.1} parent=35 // pred_region
        %p509 = scmp.eq.s32.totalorder %s20, 0
        // Predicated region
        $region41: #{conv_block_bn.1} parent=39 // pred_check
          %p510 = pneg %p509
        $region42: #{conv_block_bn.1} parent=39 // pred_check_branch
          %512 = sbr.rel (%p510) target = $region44
        $region43: #{conv_block_bn.1} parent=39 // pred_region
          %513 = vst [vmem:[#allocation2] sm:$0xff] 0.0
          %514 = vst [vmem:[#allocation3] sm:$0xff] 0.0
          %v515 = vadd.f32 %v387, %v392
          %v516 = vadd.f32 %v515, %v397
          %v517 = vadd.f32 %v516, %v402
          %v518 = vadd.f32 %v517, %v407
          %v519 = vadd.f32 %v518, %v412
          %v520 = vadd.f32 %v519, %v417
          %v521 = vadd.f32 %v520, %v422
          %v522 = vadd.f32 %v521, %v427
          %v523 = vadd.f32 %v522, %v432
          %v524 = vadd.f32 %v523, %v437
          %v525 = vadd.f32 %v524, %v442
          %v526 = vadd.f32 %v525, %v447
          %v527 = vadd.f32 %v526, %v452
          %v528 = vadd.f32 %v527, %v457
          %v529 = vadd.f32 %v528, %v462
          %v530 = vadd.f32 %v529, %v467
          %v531 = vadd.f32 %v530, %v472
          %v532 = vadd.f32 %v531, %v477
          %v533 = vadd.f32 %v532, %v482
          %v534 = vadd.f32 %v533, %v487
          %v535 = vadd.f32 %v534, %v492
          %v536 = vadd.f32 %v535, %v497
          %v537 = vadd.f32 %v536, %v502
          %v538 = vrot.slane %v537, 4
          %v539 = vadd.f32 %v537, %v538
          %v540 = vrot.slane %v539, 2
          %v541 = vadd.f32 %v539, %v540
          %v542 = vrot.slane %v541, 1
          %v543 = vadd.f32 %v541, %v542
          %v544 = vmul.f32 %v543, 0.0052083335
          %545 = vst [vmem:[#allocation4] sm:$0x1] %v544
        $region44: #{conv_block_bn.1} parent=39 // pred_fallthru
          _
        %v546 = vld [vmem:[#allocation4] sm:$0x1]
        %v548 = vlaneseq
        %v549 = vshrl.u32 %v548, 7
        %v550 = vsub.s32 0, %v549
        %v551 = vrot.slane %v546, %v550
        %v553 = vsub.f32 %v387, %v551
        %v554 = vsub.f32 %v392, %v551
        %v555 = vsub.f32 %v397, %v551
        %v556 = vsub.f32 %v402, %v551
        %v557 = vsub.f32 %v407, %v551
        %v558 = vsub.f32 %v412, %v551
        %v559 = vsub.f32 %v417, %v551
        %v560 = vsub.f32 %v422, %v551
        %v561 = vsub.f32 %v427, %v551
        %v562 = vsub.f32 %v432, %v551
        %v563 = vsub.f32 %v437, %v551
        %v564 = vsub.f32 %v442, %v551
        %v565 = vsub.f32 %v447, %v551
        %v566 = vsub.f32 %v452, %v551
        %v567 = vsub.f32 %v457, %v551
        %v568 = vsub.f32 %v462, %v551
        %v569 = vsub.f32 %v467, %v551
        %v570 = vsub.f32 %v472, %v551
        %v571 = vsub.f32 %v477, %v551
        %v572 = vsub.f32 %v482, %v551
        %v573 = vsub.f32 %v487, %v551
        %v574 = vsub.f32 %v492, %v551
        %v575 = vsub.f32 %v497, %v551
        %v576 = vsub.f32 %v502, %v551
        %v577 = vld [vmem:[#allocation2] sm:$0xff]
        %v578 = vadd.f32 %v553, %v554
        %v579 = vadd.f32 %v578, %v555
        %v580 = vadd.f32 %v579, %v556
        %v581 = vadd.f32 %v580, %v557
        %v582 = vadd.f32 %v581, %v558
        %v583 = vadd.f32 %v582, %v559
        %v584 = vadd.f32 %v583, %v560
        %v585 = vadd.f32 %v584, %v561
        %v586 = vadd.f32 %v585, %v562
        %v587 = vadd.f32 %v586, %v563
        %v588 = vadd.f32 %v587, %v564
        %v589 = vadd.f32 %v588, %v565
        %v590 = vadd.f32 %v589, %v566
        %v591 = vadd.f32 %v590, %v567
        %v592 = vadd.f32 %v591, %v568
        %v593 = vadd.f32 %v592, %v569
        %v594 = vadd.f32 %v593, %v570
        %v595 = vadd.f32 %v594, %v571
        %v596 = vadd.f32 %v595, %v572
        %v597 = vadd.f32 %v596, %v573
        %v598 = vadd.f32 %v597, %v574
        %v599 = vadd.f32 %v598, %v575
        %v600 = vadd.f32 %v599, %v576
        %v601 = vadd.f32 %v577, %v600
        %602 = vst [vmem:[#allocation2] sm:$0xff] %v601
        %v603 = vld [vmem:[#allocation3] sm:$0xff]
        %v604 = vmul.f32 %v553, %v553
        %v605 = vmul.f32 %v554, %v554
        %v606 = vmul.f32 %v555, %v555
        %v607 = vmul.f32 %v556, %v556
        %v608 = vmul.f32 %v557, %v557
        %v609 = vmul.f32 %v558, %v558
        %v610 = vmul.f32 %v559, %v559
        %v611 = vmul.f32 %v560, %v560
        %v612 = vmul.f32 %v561, %v561
        %v613 = vmul.f32 %v562, %v562
        %v614 = vmul.f32 %v563, %v563
        %v615 = vmul.f32 %v564, %v564
        %v616 = vmul.f32 %v565, %v565
        %v617 = vmul.f32 %v566, %v566
        %v618 = vmul.f32 %v567, %v567
        %v619 = vmul.f32 %v568, %v568
        %v620 = vmul.f32 %v569, %v569
        %v621 = vmul.f32 %v570, %v570
        %v622 = vmul.f32 %v571, %v571
        %v623 = vmul.f32 %v572, %v572
        %v624 = vmul.f32 %v573, %v573
        %v625 = vmul.f32 %v574, %v574
        %v626 = vmul.f32 %v575, %v575
        %v627 = vmul.f32 %v576, %v576
        %v628 = vadd.f32 %v604, %v605
        %v629 = vadd.f32 %v628, %v606
        %v630 = vadd.f32 %v629, %v607
        %v631 = vadd.f32 %v630, %v608
        %v632 = vadd.f32 %v631, %v609
        %v633 = vadd.f32 %v632, %v610
        %v634 = vadd.f32 %v633, %v611
        %v635 = vadd.f32 %v634, %v612
        %v636 = vadd.f32 %v635, %v613
        %v637 = vadd.f32 %v636, %v614
        %v638 = vadd.f32 %v637, %v615
        %v639 = vadd.f32 %v638, %v616
        %v640 = vadd.f32 %v639, %v617
        %v641 = vadd.f32 %v640, %v618
        %v642 = vadd.f32 %v641, %v619
        %v643 = vadd.f32 %v642, %v620
        %v644 = vadd.f32 %v643, %v621
        %v645 = vadd.f32 %v644, %v622
        %v646 = vadd.f32 %v645, %v623
        %v647 = vadd.f32 %v646, %v624
        %v648 = vadd.f32 %v647, %v625
        %v649 = vadd.f32 %v648, %v626
        %v650 = vadd.f32 %v649, %v627
        %v651 = vadd.f32 %v603, %v650
        %652 = vst [vmem:[#allocation3] sm:$0xff] %v651
        %p653 = scmp.eq.s32.totalorder %s20, 2
        // Predicated region
        $region45: #{conv_block_bn.1} parent=39 // pred_check
          %p654 = pneg %p653
        $region46: #{conv_block_bn.1} parent=39 // pred_check_branch
          %656 = sbr.rel (%p654) target = $region48
        $region47: #{conv_block_bn.1} parent=39 // pred_region
          %v657 = vld [vmem:[#allocation4] sm:$0x1]
          %v658 = vld [vmem:[#allocation2] sm:$0xff]
          %v659 = vrot.slane %v658, 4
          %v660 = vadd.f32 %v658, %v659
          %v661 = vrot.slane %v660, 2
          %v662 = vadd.f32 %v660, %v661
          %v663 = vrot.slane %v662, 1
          %v664 = vadd.f32 %v662, %v663
          %v665 = vmul.f32 %v657, 64.0
          %v666 = vadd.f32 %v664, %v665
          %v667 = vld [vmem:[#allocation3] sm:$0xff]
          %v668 = vrot.slane %v667, 4
          %v669 = vadd.f32 %v667, %v668
          %v670 = vrot.slane %v669, 2
          %v671 = vadd.f32 %v669, %v670
          %v672 = vrot.slane %v671, 1
          %v673 = vadd.f32 %v671, %v672
          %v674 = vmul.f32 %v665, %v657
          %v675 = vsub.f32 %v673, %v674
          %v676 = vmul.f32 %v666, 0.001953125
          %v677 = vadd.f32 %v657, %v676
          %v678 = vmul.f32 %v675, 0.001953125
          %v679 = vmul.f32 %v676, %v676
          %v680 = vsub.f32 %v678, %v679
          %v681 = vmax.f32 %v680, 0.0
          %v682 = vld [vmem:[%s2] sm:$0x1]
          %v683 = vadd.f32 %v681, 1e-05
          %v684 = vrsqrt.pop %v683
          %v685 = vmul.f32 %v682, %v684
          %686 = vst [vmem:[#allocation5] sm:$0x1] %v685
          %v687 = vld [vmem:[%s3] sm:$0x1]
          %v688 = vmul.f32 %v677, %v685
          %v689 = vsub.f32 %v687, %v688
          %690 = vst [vmem:[#allocation6] sm:$0x1] %v689
        $region48: #{conv_block_bn.1} parent=39 // pred_fallthru
          _
      $region40: #{conv_block_bn.1} parent=35 // pred_fallthru
        _
      %p691 = scmp.eq.s32.totalorder %s19, 1
      // Predicated region
      $region49: #{conv_block_bn.1} parent=35 // pred_check
        %p692 = pneg %p691
      $region50: #{conv_block_bn.1} parent=35 // pred_check_branch
        %694 = sbr.rel (%p692) target = $region52
      $region51: #{conv_block_bn.1} parent=35 // pred_region
        %v695 = vld [vmem:[#allocation5] sm:$0x1]
        %v697 = vlaneseq
        %v698 = vshrl.u32 %v697, 7
        %v699 = vsub.s32 0, %v698
        %v700 = vrot.slane %v695, %v699
        %v702 = vmul.f32 %v387, %v700
        %v703 = vmul.f32 %v392, %v700
        %v704 = vmul.f32 %v397, %v700
        %v705 = vmul.f32 %v402, %v700
        %v706 = vmul.f32 %v407, %v700
        %v707 = vmul.f32 %v412, %v700
        %v708 = vmul.f32 %v417, %v700
        %v709 = vmul.f32 %v422, %v700
        %v710 = vmul.f32 %v427, %v700
        %v711 = vmul.f32 %v432, %v700
        %v712 = vmul.f32 %v437, %v700
        %v713 = vmul.f32 %v442, %v700
        %v714 = vmul.f32 %v447, %v700
        %v715 = vmul.f32 %v452, %v700
        %v716 = vmul.f32 %v457, %v700
        %v717 = vmul.f32 %v462, %v700
        %v718 = vmul.f32 %v467, %v700
        %v719 = vmul.f32 %v472, %v700
        %v720 = vmul.f32 %v477, %v700
        %v721 = vmul.f32 %v482, %v700
        %v722 = vmul.f32 %v487, %v700
        %v723 = vmul.f32 %v492, %v700
        %v724 = vmul.f32 %v497, %v700
        %v725 = vmul.f32 %v502, %v700
        %v726 = vld [vmem:[#allocation6] sm:$0x1]
        %v728 = vlaneseq
        %v729 = vshrl.u32 %v728, 7
        %v730 = vsub.s32 0, %v729
        %v731 = vrot.slane %v726, %v730
        %v733 = vadd.f32 %v702, %v731
        %v734 = vadd.f32 %v703, %v731
        %v735 = vadd.f32 %v704, %v731
        %v736 = vadd.f32 %v705, %v731
        %v737 = vadd.f32 %v706, %v731
        %v738 = vadd.f32 %v707, %v731
        %v739 = vadd.f32 %v708, %v731
        %v740 = vadd.f32 %v709, %v731
        %v741 = vadd.f32 %v710, %v731
        %v742 = vadd.f32 %v711, %v731
        %v743 = vadd.f32 %v712, %v731
        %v744 = vadd.f32 %v713, %v731
        %v745 = vadd.f32 %v714, %v731
        %v746 = vadd.f32 %v715, %v731
        %v747 = vadd.f32 %v716, %v731
        %v748 = vadd.f32 %v717, %v731
        %v749 = vadd.f32 %v718, %v731
        %v750 = vadd.f32 %v719, %v731
        %v751 = vadd.f32 %v720, %v731
        %v752 = vadd.f32 %v721, %v731
        %v753 = vadd.f32 %v722, %v731
        %v754 = vadd.f32 %v723, %v731
        %v755 = vadd.f32 %v724, %v731
        %v756 = vadd.f32 %v725, %v731
        %v757 = vmax.f32 %v733, 0.0
        %v758 = vmax.f32 %v734, 0.0
        %v759 = vmax.f32 %v735, 0.0
        %v760 = vmax.f32 %v736, 0.0
        %v761 = vmax.f32 %v737, 0.0
        %v762 = vmax.f32 %v738, 0.0
        %v763 = vmax.f32 %v739, 0.0
        %v764 = vmax.f32 %v740, 0.0
        %v765 = vmax.f32 %v741, 0.0
        %v766 = vmax.f32 %v742, 0.0
        %v767 = vmax.f32 %v743, 0.0
        %v768 = vmax.f32 %v744, 0.0
        %v769 = vmax.f32 %v745, 0.0
        %v770 = vmax.f32 %v746, 0.0
        %v771 = vmax.f32 %v747, 0.0
        %v772 = vmax.f32 %v748, 0.0
        %v773 = vmax.f32 %v749, 0.0
        %v774 = vmax.f32 %v750, 0.0
        %v775 = vmax.f32 %v751, 0.0
        %v776 = vmax.f32 %v752, 0.0
        %v777 = vmax.f32 %v753, 0.0
        %v778 = vmax.f32 %v754, 0.0
        %v779 = vmax.f32 %v755, 0.0
        %v780 = vmax.f32 %v756, 0.0
        %781 = vst [vmem:[%s215] sm:$0xff] %v757
        %782 = vst [vmem:[%s215 + $0x8] sm:$0xff] %v758
        %783 = vst [vmem:[%s215 + $0x10] sm:$0xff] %v759
        %784 = vst [vmem:[%s215 + $0x18] sm:$0xff] %v760
        %785 = vst [vmem:[%s215 + $0x20] sm:$0xff] %v761
        %786 = vst [vmem:[%s215 + $0x28] sm:$0xff] %v762
        %787 = vst [vmem:[%s215 + $0x30] sm:$0xff] %v763
        %788 = vst [vmem:[%s215 + $0x38] sm:$0xff] %v764
        %789 = vst [vmem:[%s215 + $0x40] sm:$0xff] %v765
        %790 = vst [vmem:[%s215 + $0x48] sm:$0xff] %v766
        %791 = vst [vmem:[%s215 + $0x50] sm:$0xff] %v767
        %792 = vst [vmem:[%s215 + $0x58] sm:$0xff] %v768
        %793 = vst [vmem:[%s215 + $0x60] sm:$0xff] %v769
        %794 = vst [vmem:[%s215 + $0x68] sm:$0xff] %v770
        %795 = vst [vmem:[%s215 + $0x70] sm:$0xff] %v771
        %796 = vst [vmem:[%s215 + $0x78] sm:$0xff] %v772
        %797 = vst [vmem:[%s215 + $0x80] sm:$0xff] %v773
        %798 = vst [vmem:[%s215 + $0x88] sm:$0xff] %v774
        %799 = vst [vmem:[%s215 + $0x90] sm:$0xff] %v775
        %800 = vst [vmem:[%s215 + $0x98] sm:$0xff] %v776
        %801 = vst [vmem:[%s215 + $0xa0] sm:$0xff] %v777
        %802 = vst [vmem:[%s215 + $0xa8] sm:$0xff] %v778
        %803 = vst [vmem:[%s215 + $0xb0] sm:$0xff] %v779
        %804 = vst [vmem:[%s215 + $0xb8] sm:$0xff] %v780
      $region52: #{conv_block_bn.1} parent=35 // pred_fallthru
        _
      %s805 = smul.u32 %s20, %s19
      %s806 = smul.u32 24, %s805
      %p807 = scmp.lt.s32.totalorder %s806, 71
      %s808 = scalar_select %p807, %s806, 71
      %s809 = smul.addr %s808, 8
      %s810 = scalar_lea.vmem %s4, %s809
      // Predicated region
      $region53: #{conv_block_bn.1} parent=35 // pred_check
        %p811 = pneg %p136
      $region54: #{conv_block_bn.1} parent=35 // pred_check_branch
        %813 = sbr.rel (%p811) target = $region56
      $region55: #{conv_block_bn.1} parent=35 // pred_region
        %s814 = smul.u32 %s20, %s19
        %s815 = smul.u32 24, %s814
      $region56: #{conv_block_bn.1} parent=35 // pred_fallthru
        _
    $region36: #{conv_block_bn.1} parent=5 // pred_fallthru
      _
    %p816 = scmp.le.s32.totalorder 2, %s10
    // Predicated region
    $region57: #{conv_block_bn.1} parent=5 // pred_check
      %p817 = pneg %p816
    $region58: #{conv_block_bn.1} parent=5 // pred_check_branch
      %819 = sbr.rel (%p817) target = $region60
    $region59: #{conv_block_bn.1} parent=5 // pred_region
      %s820 = ssub.s32 %s10, 2
      // Predicated region
      $region61: #{conv_block_bn.1} parent=59 // pred_check
        %p821 = pneg %p142
      $region62: #{conv_block_bn.1} parent=59 // pred_check_branch
        %823 = sbr.rel (%p821) target = $region64
      $region63: #{conv_block_bn.1} parent=59 // pred_region
        %s824 = smul.u32 %s22, %s21
        %s825 = smul.u32 24, %s824
        %p826 = scmp.lt.s32.totalorder %s825, 71
        %s827 = scalar_select %p826, %s825, 71
        %s828 = smul.addr %s827, 8
        %s829 = scalar_lea.vmem %s4, %s828
      $region64: #{conv_block_bn.1} parent=59 // pred_fallthru
        _
    $region60: #{conv_block_bn.1} parent=5 // pred_fallthru
      _
  $region6: #{conv_block_bn.1} parent=0 // loop_footer
    %s14 = sadd.s32 1, %s10
  $region7: #{conv_block_bn.1} parent=0 // loop_footer_branch
    %9 = sbr.rel target = $region3
  $region8: #{conv_block_bn.1} parent=0 // loop_exit
    _

</llo_original>
